<compile_context>
chip_gen: v6e
topology: v6e:2x2x1
jax: 0.10.0
libtpu: 0.0.40
codegen_flags: <defaults>
</compile_context>

<pallas_src>
import functools
import math

import jax
import jax.numpy as jnp
from jax.experimental import pallas as pl
from jax.experimental.pallas import tpu as pltpu


def _embed_kernel(feat_ref, w_ref, b_ref, tab_t_ref, node_ref, out_ref,
                  *, tod_size, dow_size):
    """One (column-tile, batch) grid step.

    feat_ref : (1, 3, CT) f32  rows: [x value, tod fraction, dow fraction]
    w_ref    : (D, 1)     f32  1x1 Conv2d weight (c_in = 1)
    b_ref    : (D, 1)     f32  Conv2d bias
    tab_t_ref: (D, Kpad)  f32  [time_in_day_emb ; day_in_week_emb]^T, zero-padded
    node_ref : (D, CT)    f32  node_emb pre-expanded over the flattened (n, t) axis
    out_ref  : (1, D, CT) f32  tile of the (B, D, N*T) output
    """
    feat = feat_ref[0, :, :]                      # (3, CT)
    xv = feat[0:1, :]                             # (1, CT)
    tod = feat[1:2, :]                            # (1, CT)
    dow = feat[2:3, :]                            # (1, CT)

    # value embedding: 1x1 Conv2d with a single input channel == per-element affine.
    val = xv * w_ref[...] + b_ref[...]            # (D, CT)

    # Fused time-of-day / day-of-week gather: build one "two-hot" (Kpad, CT)
    # matrix and do a single MXU matmul against the concatenated table.
    # torch ".type(torch.LongTensor)" truncates toward zero; clamp handles frac==1.0.
    tod_idx = jnp.clip((tod * tod_size).astype(jnp.int32), 0, tod_size - 1)            # (1, CT)
    dow_idx = jnp.clip((dow * dow_size).astype(jnp.int32), 0, dow_size - 1) + tod_size  # (1, CT)

    kpad = tab_t_ref.shape[1]
    ct = feat.shape[1]
    rows = jax.lax.broadcasted_iota(jnp.int32, (kpad, ct), 0)
    hot = ((rows == tod_idx) | (rows == dow_idx)).astype(jnp.float32)                   # (Kpad, CT)
    emb = jnp.dot(tab_t_ref[...], hot, preferred_element_type=jnp.float32)              # (D, CT)

    # Node embedding: plain broadcast-add (no one-hot matmul).  fusion_type == 'SUM'.
    out_ref[0, :, :] = val + emb + node_ref[...]
    # TODO(synk): nn.Dropout(p=0.1) is treated as identity (eval mode); training-mode
    # masking would need pltpu.prng_* here.


@functools.partial(jax.jit, static_argnames=("tod_size", "dow_size"))
def data_embedding2(x, x_mark, params, *, tod_size, dow_size):
    B, T, N = x.shape
    D = params["node_tab"].shape[1]
    NT = N * T

    # n-major / t-minor flattening == contiguous layout of the (B, D, N, T) output.
    x_nt = jnp.transpose(x, (0, 2, 1)).reshape(B, NT)
    tod_nt = jnp.transpose(x_mark[..., 0], (0, 2, 1)).reshape(B, NT)
    dow_nt = jnp.transpose(x_mark[..., 1], (0, 2, 1)).reshape(B, NT)
    feat = jnp.stack([x_nt, tod_nt, dow_nt], axis=1).astype(jnp.float32)   # (B, 3, NT)

    # Concatenated + zero-padded (K -> multiple of 128) table, transposed to (D, Kpad).
    k = tod_size + dow_size
    kpad = ((k + 127) // 128) * 128
    tab = jnp.concatenate([params["tod_tab"], params["dow_tab"]], axis=0)
    tab = jnp.pad(tab, ((0, kpad - k), (0, 0))).astype(jnp.float32)
    tab_t = jnp.transpose(tab)                                              # (D, Kpad)

    # Node embedding expanded once to the flattened (n, t) axis: col n*T+t -> node_tab[n].
    node_exp_t = jnp.repeat(
        jnp.transpose(params["node_tab"]).astype(jnp.float32), T, axis=1)   # (D, NT)

    w_col = params["w"].reshape(D, 1).astype(jnp.float32)
    b_col = params["b"].reshape(D, 1).astype(jnp.float32)

    # Column-tile size: full N*T if the output block stays small (safe even on
    # v7x's 64 MiB VMEM with double buffering); otherwise a multiple of 128
    # (ragged last tile is masked by the Pallas pipeline).
    out_block_budget = 2 * 1024 * 1024
    if NT * D * 4 <= out_block_budget:
        ct = NT
    else:
        ct = max(128, (out_block_budget // (D * 4)) // 128 * 128)
    num_col_blocks = pl.cdiv(NT, ct)

    kern = functools.partial(_embed_kernel, tod_size=tod_size, dow_size=dow_size)

    out_flat = pl.pallas_call(
        kern,
        grid=(num_col_blocks, B),
        in_specs=[
            pl.BlockSpec((1, 3, ct), lambda j, b: (b, 0, j)),   # packed x / tod / dow
            pl.BlockSpec((D, 1), lambda j, b: (0, 0)),          # conv weight (c_in=1)
            pl.BlockSpec((D, 1), lambda j, b: (0, 0)),          # conv bias
            pl.BlockSpec((D, kpad), lambda j, b: (0, 0)),       # fused tod/dow table
            pl.BlockSpec((D, ct), lambda j, b: (0, j)),         # expanded node table
        ],
        out_specs=pl.BlockSpec((1, D, ct), lambda j, b: (b, 0, j)),
        out_shape=jax.ShapeDtypeStruct((B, D, NT), jnp.float32),
        compiler_params=pltpu.CompilerParams(
            dimension_semantics=("parallel", "parallel")),
    )(feat, w_col, b_col, tab_t, node_exp_t)

    # Free reshape: (B, D, N*T) has the same contiguous memory as (B, D, N, T).
    return out_flat.reshape(B, D, N, T)


if __name__ == "__main__":
    key = jax.random.PRNGKey(0)
    B, T, N, D = 2, 8, 16, 32          # batch, steps, num_nodes, d_model
    c_in = 1                           # forced by x.unsqueeze(-1) in the reference
    tod_size, dow_size = 24, 7

    ks = jax.random.split(key, 7)

    # Conv2d weight: kaiming_normal_(fan_in=1, 'leaky_relu'); bias: default uniform.
    gain = math.sqrt(2.0 / (1.0 + 0.01 ** 2))
    w = (gain / math.sqrt(c_in)) * jax.random.normal(ks[0], (D,), jnp.float32)
    b_bound = 1.0 / math.sqrt(c_in)
    b = jax.random.uniform(ks[1], (D,), jnp.float32, -b_bound, b_bound)

    def xavier_uniform(k, shape):
        bound = math.sqrt(6.0 / (shape[0] + shape[1]))
        return jax.random.uniform(k, shape, jnp.float32, -bound, bound)

    node_tab = xavier_uniform(ks[2], (N, D))
    tod_tab = xavier_uniform(ks[3], (tod_size, D))
    dow_tab = xavier_uniform(ks[4], (dow_size, D))
    params = dict(w=w, b=b, tod_tab=tod_tab, dow_tab=dow_tab, node_tab=node_tab)

    x = jax.random.normal(ks[5], (B, T, N), jnp.float32)
    x_mark = jax.random.uniform(ks[6], (B, T, N, 2), jnp.float32, 0.0, 0.999)

    out = data_embedding2(x, x_mark, params, tod_size=tod_size, dow_size=dow_size)
    out = jax.block_until_ready(out)

    # Pure-JAX reference (same semantics as the PyTorch forward, eval mode, SUM fusion).
    tod_idx = jnp.clip((x_mark[..., 0] * tod_size).astype(jnp.int32), 0, tod_size - 1)
    dow_idx = jnp.clip((x_mark[..., 1] * dow_size).astype(jnp.int32), 0, dow_size - 1)
    ref = (x[..., None] * w[None, None, None, :] + b
           + tod_tab[tod_idx] + dow_tab[dow_idx]
           + node_tab[None, None, :, :])                       # (B, T, N, D)
    ref = jnp.transpose(ref, (0, 3, 2, 1))                     # (B, D, N, T)

    assert out.shape == (B, D, N, T), out.shape
    err = float(jnp.max(jnp.abs(out - ref)))
    assert err < 1e-5, err
    print("KERNEL_OK")
</pallas_src>

<mosaic_0001>
module attributes {stable_mosaic.version = 11 : i64} {
  func.func @_embed_kernel(%arg0: i32, %arg1: i32, %arg2: memref<1x3x128xf32, #tpu.memory_space<vmem>>, %arg3: memref<32x1xf32, #tpu.memory_space<vmem>>, %arg4: memref<32x1xf32, #tpu.memory_space<vmem>>, %arg5: memref<32x128xf32, #tpu.memory_space<vmem>>, %arg6: memref<32x128xf32, #tpu.memory_space<vmem>>, %arg7: memref<1x32x128xf32, #tpu.memory_space<vmem>>) attributes {dimension_semantics = [#tpu.dimension_semantics<parallel>, #tpu.dimension_semantics<parallel>], iteration_bounds = array<i64: 1, 2>, scalar_prefetch = 0 : i64, scratch_operands = 0 : i64, tpu.core_type = #tpu.core_type<tc>, window_params = [{transform_indices = @transform_0, window_bounds = array<i64: 1, 3, 128>}, {pipeline_mode = #tpu.pipeline_mode<synchronous>, transform_indices = @transform_1, window_bounds = array<i64: 32, 1>}, {pipeline_mode = #tpu.pipeline_mode<synchronous>, transform_indices = @transform_2, window_bounds = array<i64: 32, 1>}, {pipeline_mode = #tpu.pipeline_mode<synchronous>, transform_indices = @transform_3, window_bounds = array<i64: 32, 128>}, {transform_indices = @transform_4, window_bounds = array<i64: 32, 128>}, {transform_indices = @transform_5, window_bounds = array<i64: 1, 32, 128>}]} {
    %c0 = arith.constant 0 : index
    %c0_0 = arith.constant 0 : index
    %c0_1 = arith.constant 0 : index
    %0 = vector.load %arg2[%c0, %c0_0, %c0_1] : memref<1x3x128xf32, #tpu.memory_space<vmem>>, vector<1x3x128xf32>
    %1 = vector.shape_cast %0 : vector<1x3x128xf32> to vector<3x128xf32>
    %2 = vector.extract_strided_slice %1 {offsets = [0, 0], sizes = [1, 128], strides = [1, 1]} : vector<3x128xf32> to vector<1x128xf32>
    %3 = vector.extract_strided_slice %1 {offsets = [1, 0], sizes = [1, 128], strides = [1, 1]} : vector<3x128xf32> to vector<1x128xf32>
    %4 = vector.extract_strided_slice %1 {offsets = [2, 0], sizes = [1, 128], strides = [1, 1]} : vector<3x128xf32> to vector<1x128xf32>
    %c0_2 = arith.constant 0 : index
    %c0_3 = arith.constant 0 : index
    %5 = vector.load %arg3[%c0_2, %c0_3] : memref<32x1xf32, #tpu.memory_space<vmem>>, vector<32x1xf32>
    %6 = vector.broadcast %2 : vector<1x128xf32> to vector<32x128xf32>
    %7 = vector.broadcast %5 : vector<32x1xf32> to vector<32x128xf32>
    %8 = arith.mulf %6, %7 : vector<32x128xf32>
    %c0_4 = arith.constant 0 : index
    %c0_5 = arith.constant 0 : index
    %9 = vector.load %arg4[%c0_4, %c0_5] : memref<32x1xf32, #tpu.memory_space<vmem>>, vector<32x1xf32>
    %10 = vector.broadcast %9 : vector<32x1xf32> to vector<32x128xf32>
    %11 = arith.addf %8, %10 : vector<32x128xf32>
    %cst = arith.constant 2.400000e+01 : f32
    %12 = vector.broadcast %cst : f32 to vector<1x128xf32>
    %13 = arith.mulf %3, %12 : vector<1x128xf32>
    %14 = arith.fptosi %13 : vector<1x128xf32> to vector<1x128xi32>
    %c0_i32 = arith.constant 0 : i32
    %c23_i32 = arith.constant 23 : i32
    %15 = vector.broadcast %c0_i32 : i32 to vector<1x128xi32>
    %16 = arith.maxsi %15, %14 : vector<1x128xi32>
    %17 = vector.broadcast %c23_i32 : i32 to vector<1x128xi32>
    %18 = arith.minsi %17, %16 : vector<1x128xi32>
    %cst_6 = arith.constant 7.000000e+00 : f32
    %19 = vector.broadcast %cst_6 : f32 to vector<1x128xf32>
    %20 = arith.mulf %4, %19 : vector<1x128xf32>
    %21 = arith.fptosi %20 : vector<1x128xf32> to vector<1x128xi32>
    %c0_i32_7 = arith.constant 0 : i32
    %c6_i32 = arith.constant 6 : i32
    %22 = vector.broadcast %c0_i32_7 : i32 to vector<1x128xi32>
    %23 = arith.maxsi %22, %21 : vector<1x128xi32>
    %24 = vector.broadcast %c6_i32 : i32 to vector<1x128xi32>
    %25 = arith.minsi %24, %23 : vector<1x128xi32>
    %c24_i32 = arith.constant 24 : i32
    %26 = vector.broadcast %c24_i32 : i32 to vector<1x128xi32>
    %27 = arith.addi %25, %26 : vector<1x128xi32>
    %28 = tpu.iota {dimensions = array<i32: 0>} : vector<128x128xi32>
    %29 = vector.broadcast %18 : vector<1x128xi32> to vector<128x128xi32>
    %30 = arith.cmpi eq, %28, %29 : vector<128x128xi32>
    %31 = vector.broadcast %27 : vector<1x128xi32> to vector<128x128xi32>
    %32 = arith.cmpi eq, %28, %31 : vector<128x128xi32>
    %33 = arith.ori %30, %32 : vector<128x128xi1>
    %34 = arith.extui %33 : vector<128x128xi1> to vector<128x128xi32>
    %35 = arith.sitofp %34 : vector<128x128xi32> to vector<128x128xf32>
    %c0_8 = arith.constant 0 : index
    %c0_9 = arith.constant 0 : index
    %36 = vector.load %arg5[%c0_8, %c0_9] : memref<32x128xf32, #tpu.memory_space<vmem>>, vector<32x128xf32>
    %cst_10 = arith.constant dense<0.000000e+00> : vector<32x128xf32>
    %37 = tpu.matmul %36, %35, %cst_10 {dimension_numbers = #tpu.dot_dimension_numbers<[1], [0], [0], [1], [0, 0, 1, 1], [], []>} : vector<32x128xf32>, vector<128x128xf32>, vector<32x128xf32> -> vector<32x128xf32>
    %38 = arith.addf %11, %37 : vector<32x128xf32>
    %c0_11 = arith.constant 0 : index
    %c0_12 = arith.constant 0 : index
    %39 = vector.load %arg6[%c0_11, %c0_12] : memref<32x128xf32, #tpu.memory_space<vmem>>, vector<32x128xf32>
    %40 = arith.addf %38, %39 : vector<32x128xf32>
    %c0_13 = arith.constant 0 : index
    %c0_14 = arith.constant 0 : index
    %c0_15 = arith.constant 0 : index
    %41 = vector.load %arg7[%c0_13, %c0_14, %c0_15] : memref<1x32x128xf32, #tpu.memory_space<vmem>>, vector<1x32x128xf32>
    %42 = vector.shape_cast %41 : vector<1x32x128xf32> to vector<32x128xf32>
    %43 = vector.shape_cast %40 : vector<32x128xf32> to vector<1x32x128xf32>
    tpu.vector_store %arg7[%c0_13, %c0_14, %c0_15], %43 {strides = array<i32>} : memref<1x32x128xf32, #tpu.memory_space<vmem>>, vector<1x32x128xf32>,
    return
  }
  func.func @transform_0(%arg0: i32, %arg1: i32) -> (i32, i32, i32) {
    %c0_i32 = arith.constant 0 : i32
    %c0_i32_0 = arith.constant 0 : i32
    return %arg1, %c0_i32, %arg0 : i32, i32, i32
  }
  func.func @transform_1(%arg0: i32, %arg1: i32) -> (i32, i32) {
    %c0_i32 = arith.constant 0 : i32
    %c0_i32_0 = arith.constant 0 : i32
    %c0_i32_1 = arith.constant 0 : i32
    return %c0_i32, %c0_i32_0 : i32, i32
  }
  func.func @transform_2(%arg0: i32, %arg1: i32) -> (i32, i32) {
    %c0_i32 = arith.constant 0 : i32
    %c0_i32_0 = arith.constant 0 : i32
    %c0_i32_1 = arith.constant 0 : i32
    return %c0_i32, %c0_i32_0 : i32, i32
  }
  func.func @transform_3(%arg0: i32, %arg1: i32) -> (i32, i32) {
    %c0_i32 = arith.constant 0 : i32
    %c0_i32_0 = arith.constant 0 : i32
    %c0_i32_1 = arith.constant 0 : i32
    return %c0_i32, %c0_i32_0 : i32, i32
  }
  func.func @transform_4(%arg0: i32, %arg1: i32) -> (i32, i32) {
    %c0_i32 = arith.constant 0 : i32
    %c0_i32_0 = arith.constant 0 : i32
    return %c0_i32, %arg0 : i32, i32
  }
  func.func @transform_5(%arg0: i32, %arg1: i32) -> (i32, i32, i32) {
    %c0_i32 = arith.constant 0 : i32
    %c0_i32_0 = arith.constant 0 : i32
    return %arg1, %c0_i32, %arg0 : i32, i32, i32
  }
}

</mosaic_0001>

<llo_original>
// kernel: data_embedding2.1
$region0: #{data_embedding2.1}
  #allocation0 [shape = 'u32[]', space=smem, size = 0x4, offset = 0x4, fixed_abs, tag = 'smem constant byte address 0x4 - core index']
  #allocation1 [shape = 'u32[144,128]{1,0:T(1,128)}', space=vmem, size = 0x12000, scoped, tag = 'internal scratch']
  %s0 = inlined_call_operand.vmem [shape: f32[2,3,128], index: 0, kind: input, shape index: {}]
  %s1 = inlined_call_operand.vmem [shape: f32[32,1], index: 1, kind: input, shape index: {}]
  %s2 = inlined_call_operand.vmem [shape: f32[32,1], index: 2, kind: input, shape index: {}]
  %s3 = inlined_call_operand.vmem [shape: f32[32,128], index: 3, kind: input, shape index: {}]
  %s4 = inlined_call_operand.vmem [shape: f32[32,128], index: 4, kind: input, shape index: {}]
  %s5 = inlined_call_operand.vmem [shape: f32[2,32,128], index: 5, kind: output, shape index: {}]
  %s6 = sld [smem:[#allocation0]]
  $region53: #{data_embedding2.1} parent=0
    _
  %s8 = ssub.s32 1, %s6
  %s9 = scalar_select 0, %s8, %s6
  loop: start=0, step=1, limit=4
  $region2: #{data_embedding2.1} parent=0 // loop_pre_header
    _
  $region3: #{data_embedding2.1} parent=0 // loop_header
    %s11 = sphi 0, %s15
    %p12 = scmp.ge.s32.totalorder %s11, 4
    %s18 = sphi 0, %s30
    %s19 = sphi 0, %s26
    %s20 = sphi 0, %s18
    %s21 = sphi 0, %s19
    %s22 = sphi 0, %s20
    %s23 = sphi 0, %s21
    %s35 = sphi 0, %s37
    %s38 = sphi 0, %s35
    %s39 = sphi 0, %s38
    %s55 = sphi 0, %s39
    %s59 = sphi 0, %s59
    %s61 = sphi 0, %s59
    %s62 = sphi 0, %s61
    %s76 = sphi 0, %s62
    %s80 = sphi 0, %s80
    %s82 = sphi 0, %s80
    %s83 = sphi 0, %s82
    %s97 = sphi 0, %s83
    %s101 = sphi 0, %s101
    %s103 = sphi 0, %s101
    %s104 = sphi 0, %s103
    %s118 = sphi 0, %s104
    %s124 = sphi 0, %s126
    %s127 = sphi 0, %s124
    %s128 = sphi 0, %s127
    %s144 = sphi 0, %s128
    %s152 = sphi 0, %s154
    %s155 = sphi 0, %s152
    %s156 = sphi 0, %s155
    %s172 = sphi 0, %s156
  $region4: #{data_embedding2.1} parent=0 // loop_header_branch
    %14 = sbr.rel (%p12) target = $region8
  $region5: #{data_embedding2.1} parent=0 // loop_body
    %s16 = ssub.s32 %s11, 1
    %s17 = ssub.s32 %s11, 2
    %s24 = sadd.s32 1, %s19
    %p25 = scmp.ge.s32.totalorder %s24, 2
    %s26 = scalar_select %p25, 0, %s24
    %s27 = sadd.s32 1, %s18
    %s28 = scalar_select %p25, %s27, %s18
    %p29 = scmp.ge.s32.totalorder %s28, 1
    %s30 = scalar_select %p29, 0, %s28
    %s31 = ssub.s32 %s19, %s26
    %s32 = ssub.s32 %s18, %s30
    %s33 = sor.u32 %s31, %s32
    %p34 = scmp.eq.s32.totalorder %s33, 0
    %s36 = sadd.s32 %s35, 1
    %s37 = scalar_select %p34, %s35, %s36
    %p40 = pneg %p34
    %p41 = scmp.eq.s32.totalorder %s11, 1
    %p42 = por %p40, %p41
    %p43 = scmp.ne.s32.totalorder %s35, %s38
    %p44 = scmp.eq.s32.totalorder %s11, 0
    %p45 = por %p43, %p44
    %p46 = scmp.ne.s32.totalorder %s35, %s38
    %p47 = scmp.eq.s32.totalorder %s16, 1
    %p48 = por %p46, %p47
    %p49 = scmp.ne.s32.totalorder %s38, %s39
    %p50 = scmp.eq.s32.totalorder %s16, 0
    %p51 = por %p49, %p50
    %p52 = scmp.ne.s32.totalorder %s38, %s39
    %p53 = scmp.eq.s32.totalorder %s17, 1
    %p54 = por %p52, %p53
    %p56 = scmp.ne.s32.totalorder %s39, %s55
    %p57 = scmp.eq.s32.totalorder %s17, 0
    %p58 = por %p56, %p57
    %s60 = sadd.s32 %s59, 1
    %p63 = scmp.eq.s32.totalorder %s11, 1
    %p64 = scmp.ne.s32.totalorder %s59, %s61
    %p65 = scmp.eq.s32.totalorder %s11, 0
    %p66 = por %p64, %p65
    %p67 = scmp.ne.s32.totalorder %s59, %s61
    %p68 = scmp.eq.s32.totalorder %s16, 1
    %p69 = por %p67, %p68
    %p70 = scmp.ne.s32.totalorder %s61, %s62
    %p71 = scmp.eq.s32.totalorder %s16, 0
    %p72 = por %p70, %p71
    %p73 = scmp.ne.s32.totalorder %s61, %s62
    %p74 = scmp.eq.s32.totalorder %s17, 1
    %p75 = por %p73, %p74
    %p77 = scmp.ne.s32.totalorder %s62, %s76
    %p78 = scmp.eq.s32.totalorder %s17, 0
    %p79 = por %p77, %p78
    %s81 = sadd.s32 %s80, 1
    %p84 = scmp.eq.s32.totalorder %s11, 1
    %p85 = scmp.ne.s32.totalorder %s80, %s82
    %p86 = scmp.eq.s32.totalorder %s11, 0
    %p87 = por %p85, %p86
    %p88 = scmp.ne.s32.totalorder %s80, %s82
    %p89 = scmp.eq.s32.totalorder %s16, 1
    %p90 = por %p88, %p89
    %p91 = scmp.ne.s32.totalorder %s82, %s83
    %p92 = scmp.eq.s32.totalorder %s16, 0
    %p93 = por %p91, %p92
    %p94 = scmp.ne.s32.totalorder %s82, %s83
    %p95 = scmp.eq.s32.totalorder %s17, 1
    %p96 = por %p94, %p95
    %p98 = scmp.ne.s32.totalorder %s83, %s97
    %p99 = scmp.eq.s32.totalorder %s17, 0
    %p100 = por %p98, %p99
    %s102 = sadd.s32 %s101, 1
    %p105 = scmp.eq.s32.totalorder %s11, 1
    %p106 = scmp.ne.s32.totalorder %s101, %s103
    %p107 = scmp.eq.s32.totalorder %s11, 0
    %p108 = por %p106, %p107
    %p109 = scmp.ne.s32.totalorder %s101, %s103
    %p110 = scmp.eq.s32.totalorder %s16, 1
    %p111 = por %p109, %p110
    %p112 = scmp.ne.s32.totalorder %s103, %s104
    %p113 = scmp.eq.s32.totalorder %s16, 0
    %p114 = por %p112, %p113
    %p115 = scmp.ne.s32.totalorder %s103, %s104
    %p116 = scmp.eq.s32.totalorder %s17, 1
    %p117 = por %p115, %p116
    %p119 = scmp.ne.s32.totalorder %s104, %s118
    %p120 = scmp.eq.s32.totalorder %s17, 0
    %p121 = por %p119, %p120
    %s122 = ssub.s32 %s18, %s30
    %p123 = scmp.eq.s32.totalorder %s122, 0
    %s125 = sadd.s32 %s124, 1
    %s126 = scalar_select %p123, %s124, %s125
    %p129 = pneg %p123
    %p130 = scmp.eq.s32.totalorder %s11, 1
    %p131 = por %p129, %p130
    %p132 = scmp.ne.s32.totalorder %s124, %s127
    %p133 = scmp.eq.s32.totalorder %s11, 0
    %p134 = por %p132, %p133
    %p135 = scmp.ne.s32.totalorder %s124, %s127
    %p136 = scmp.eq.s32.totalorder %s16, 1
    %p137 = por %p135, %p136
    %p138 = scmp.ne.s32.totalorder %s127, %s128
    %p139 = scmp.eq.s32.totalorder %s16, 0
    %p140 = por %p138, %p139
    %p141 = scmp.ne.s32.totalorder %s127, %s128
    %p142 = scmp.eq.s32.totalorder %s17, 1
    %p143 = por %p141, %p142
    %p145 = scmp.ne.s32.totalorder %s128, %s144
    %p146 = scmp.eq.s32.totalorder %s17, 0
    %p147 = por %p145, %p146
    %s148 = ssub.s32 %s19, %s26
    %s149 = ssub.s32 %s18, %s30
    %s150 = sor.u32 %s148, %s149
    %p151 = scmp.eq.s32.totalorder %s150, 0
    %s153 = sadd.s32 %s152, 1
    %s154 = scalar_select %p151, %s152, %s153
    %p157 = pneg %p151
    %p158 = scmp.eq.s32.totalorder %s11, 1
    %p159 = por %p157, %p158
    %p160 = scmp.ne.s32.totalorder %s152, %s155
    %p161 = scmp.eq.s32.totalorder %s11, 0
    %p162 = por %p160, %p161
    %p163 = scmp.ne.s32.totalorder %s152, %s155
    %p164 = scmp.eq.s32.totalorder %s16, 1
    %p165 = por %p163, %p164
    %p166 = scmp.ne.s32.totalorder %s155, %s156
    %p167 = scmp.eq.s32.totalorder %s16, 0
    %p168 = por %p166, %p167
    %p169 = scmp.ne.s32.totalorder %s155, %s156
    %p170 = scmp.eq.s32.totalorder %s17, 1
    %p171 = por %p169, %p170
    %p173 = scmp.ne.s32.totalorder %s156, %s172
    %p174 = scmp.eq.s32.totalorder %s17, 0
    %p175 = por %p173, %p174
    %p176 = scmp.le.s32.totalorder 1, %s11
    %p177 = scmp.lt.s32.totalorder %s11, 3
    %p178 = pnand %p176, %p177
    %p179 = pneg %p178
    // Predicated region
    $region9: #{data_embedding2.1} parent=5 // pred_check
      _
    $region10: #{data_embedding2.1} parent=5 // pred_check_branch
      %181 = sbr.rel (%p178) target = $region12
    $region11: #{data_embedding2.1} parent=5 // pred_region
      %s182 = ssub.s32 %s11, 1
      // Predicated region
      $region13: #{data_embedding2.1} parent=11 // pred_check
        %p183 = pneg %p72
      $region14: #{data_embedding2.1} parent=11 // pred_check_branch
        %185 = sbr.rel (%p183) target = $region16
      $region15: #{data_embedding2.1} parent=11 // pred_region
        _
      $region16: #{data_embedding2.1} parent=11 // pred_fallthru
        _
      // Predicated region
      $region17: #{data_embedding2.1} parent=11 // pred_check
        %p186 = pneg %p93
      $region18: #{data_embedding2.1} parent=11 // pred_check_branch
        %188 = sbr.rel (%p186) target = $region20
      $region19: #{data_embedding2.1} parent=11 // pred_region
        _
      $region20: #{data_embedding2.1} parent=11 // pred_fallthru
        _
      // Predicated region
      $region21: #{data_embedding2.1} parent=11 // pred_check
        %p189 = pneg %p114
      $region22: #{data_embedding2.1} parent=11 // pred_check_branch
        %191 = sbr.rel (%p189) target = $region24
      $region23: #{data_embedding2.1} parent=11 // pred_region
        _
      $region24: #{data_embedding2.1} parent=11 // pred_fallthru
        _
      // Predicated region
      $region25: #{data_embedding2.1} parent=11 // pred_check
        %p192 = pneg %p140
      $region26: #{data_embedding2.1} parent=11 // pred_check_branch
        %194 = sbr.rel (%p192) target = $region28
      $region27: #{data_embedding2.1} parent=11 // pred_region
        %p195 = scmp.lt.s32.totalorder %s20, 0
        %s196 = scalar_select %p195, %s20, 0
        %s197 = smul.addr %s196, 8
        %s198 = scalar_lea.vmem %s4, %s197
      $region28: #{data_embedding2.1} parent=11 // pred_fallthru
        _
    $region12: #{data_embedding2.1} parent=5 // pred_fallthru
      _
    %p199 = scmp.lt.s32.totalorder %s11, 2
    // Predicated region
    $region29: #{data_embedding2.1} parent=5 // pred_check
      %p200 = pneg %p199
    $region30: #{data_embedding2.1} parent=5 // pred_check_branch
      %202 = sbr.rel (%p200) target = $region32
    $region31: #{data_embedding2.1} parent=5 // pred_region
      // Predicated region
      $region33: #{data_embedding2.1} parent=31 // pred_check
        %p203 = pneg %p45
      $region34: #{data_embedding2.1} parent=31 // pred_check_branch
        %205 = sbr.rel (%p203) target = $region36
      $region35: #{data_embedding2.1} parent=31 // pred_region
        %p206 = scmp.lt.s32.totalorder %s19, 1
        %s207 = scalar_select %p206, %s19, 1
        %p208 = scmp.lt.s32.totalorder %s18, 0
        %s209 = scalar_select %p208, %s18, 0
        %s210 = sadd.s32 %s209, %s207
        %s211 = smul.addr %s210, 4
        %s212 = scalar_lea.vmem %s0, %s211
      $region36: #{data_embedding2.1} parent=31 // pred_fallthru
        _
    $region32: #{data_embedding2.1} parent=5 // pred_fallthru
      _
    %p213 = scmp.le.s32.totalorder 1, %s11
    %p214 = scmp.lt.s32.totalorder %s11, 3
    %p215 = pnand %p213, %p214
    %p216 = pneg %p215
    // Predicated region
    $region37: #{data_embedding2.1} parent=5 // pred_check
      _
    $region38: #{data_embedding2.1} parent=5 // pred_check_branch
      %218 = sbr.rel (%p215) target = $region40
    $region39: #{data_embedding2.1} parent=5 // pred_region
      %s219 = ssub.s32 %s11, 1
      %p220 = scmp.lt.s32.totalorder %s21, 1
      %s221 = scalar_select %p220, %s21, 1
      %p222 = scmp.lt.s32.totalorder %s20, 0
      %s223 = scalar_select %p222, %s20, 0
      %s224 = sadd.s32 %s223, %s221
      %s225 = smul.addr %s224, 4
      %s226 = scalar_lea.vmem %s0, %s225
      %p227 = pneg %p51
      %p228 = pneg %p48
      %p229 = pneg %p72
      %p230 = pneg %p69
      %p231 = pneg %p93
      %p232 = pneg %p90
      %p233 = pneg %p114
      %p234 = pneg %p111
      %p235 = scmp.lt.s32.totalorder %s20, 0
      %s236 = scalar_select %p235, %s20, 0
      %s237 = smul.addr %s236, 8
      %s238 = scalar_lea.vmem %s4, %s237
      %p239 = pneg %p140
      %p240 = pneg %p137
      %p241 = pneg %p168
      %p242 = pneg %p165
      %p243 = scmp.lt.s32.totalorder %s21, 1
      %s244 = scalar_select %p243, %s21, 1
      %p245 = scmp.lt.s32.totalorder %s20, 0
      %s246 = scalar_select %p245, %s20, 0
      %s247 = smul.addr %s244, 4
      %s248 = sadd.s32 %s246, %s247
      %s249 = smul.addr %s248, 8
      %s250 = scalar_lea.vmem %s5, %s249
      %p251 = scmp.lt.s32.totalorder %s21, 1
      %s252 = scalar_select %p251, %s21, 1
      %p253 = scmp.lt.s32.totalorder %s20, 0
      %s254 = scalar_select %p253, %s20, 0
      %s255 = sadd.s32 %s254, %s252
      %s256 = smul.addr %s255, 4
      %s257 = scalar_lea.vmem %s0, %s256
      %p258 = scmp.lt.s32.totalorder %s20, 0
      %s259 = scalar_select %p258, %s20, 0
      %s260 = smul.addr %s259, 8
      %s261 = scalar_lea.vmem %s4, %s260
      %p262 = scmp.lt.s32.totalorder %s21, 1
      %s263 = scalar_select %p262, %s21, 1
      %p264 = scmp.lt.s32.totalorder %s20, 0
      %s265 = scalar_select %p264, %s20, 0
      %s266 = smul.addr %s263, 4
      %s267 = sadd.s32 %s265, %s266
      %s268 = smul.addr %s267, 8
      %s269 = scalar_lea.vmem %s5, %s268
      %v270 = vld [vmem:[%s257] sm:$0x7]
      %v271 = vld [vmem:[%s1] sm:$0xff]
      %v272 = vld [vmem:[%s1 + $0x8] sm:$0xff]
      %v273 = vld [vmem:[%s1 + $0x10] sm:$0xff]
      %v274 = vld [vmem:[%s1 + $0x18] sm:$0xff]
      %v275 = vlaneseq
      %v276 = vshrl.u32 %v275, 7
      %v277 = vsub.s32 0, %v276
      %v278 = vrot.slane %v270, %v277
      %280 = vset.pattern.permute.xlu0 0
      %281 = vperm.xlu0 %280, %v271
      %v282 = vpop.permute.xlu0 %281
      %285 = vset.pattern.permute.xlu0 0
      %286 = vperm.xlu0 %285, %v272
      %v287 = vpop.permute.xlu0 %286
      %290 = vset.pattern.permute.xlu0 0
      %291 = vperm.xlu0 %290, %v273
      %v292 = vpop.permute.xlu0 %291
      %295 = vset.pattern.permute.xlu0 0
      %296 = vperm.xlu0 %295, %v274
      %v297 = vpop.permute.xlu0 %296
      %v299 = vmul.f32 %v278, %v282
      %v300 = vmul.f32 %v278, %v287
      %v301 = vmul.f32 %v278, %v292
      %v302 = vmul.f32 %v278, %v297
      %v303 = vld [vmem:[%s2] sm:$0xff]
      %v304 = vld [vmem:[%s2 + $0x8] sm:$0xff]
      %v305 = vld [vmem:[%s2 + $0x10] sm:$0xff]
      %v306 = vld [vmem:[%s2 + $0x18] sm:$0xff]
      %308 = vset.pattern.permute.xlu0 0
      %309 = vperm.xlu0 %308, %v303
      %v310 = vpop.permute.xlu0 %309
      %313 = vset.pattern.permute.xlu0 0
      %314 = vperm.xlu0 %313, %v304
      %v315 = vpop.permute.xlu0 %314
      %318 = vset.pattern.permute.xlu0 0
      %319 = vperm.xlu0 %318, %v305
      %v320 = vpop.permute.xlu0 %319
      %323 = vset.pattern.permute.xlu0 0
      %324 = vperm.xlu0 %323, %v306
      %v325 = vpop.permute.xlu0 %324
      %v327 = vadd.f32 %v299, %v310
      %v328 = vadd.f32 %v300, %v315
      %v329 = vadd.f32 %v301, %v320
      %v330 = vadd.f32 %v302, %v325
      %v331 = vmul.f32 %v270, 24.0
      %v332 = vcvt.f32.s32.to.zero.pseudo %v331
      %vm333 = vcmp.gt.s32.totalorder %v332, 0
      %v334 = vsel %vm333, %v332, 0
      %vm335 = vcmp.lt.s32.totalorder %v334, 23
      %v336 = vsel %vm335, %v334, 23
      %v337 = vmul.f32 %v270, 7.0
      %v338 = vcvt.f32.s32.to.zero.pseudo %v337
      %vm339 = vcmp.gt.s32.totalorder %v338, 0
      %v340 = vsel %vm339, %v338, 0
      %vm341 = vcmp.lt.s32.totalorder %v340, 6
      %v342 = vsel %vm341, %v340, 6
      %v343 = vadd.s32 %v342, 24
      %v344 = vlaneseq
      %v345 = vshrl.u32 %v344, 7
      %v346 = vadd.s32 %v345, 8
      %v347 = vadd.s32 %v345, 16
      %v348 = vadd.s32 %v345, 24
      %v349 = vadd.s32 %v345, 32
      %v350 = vadd.s32 %v345, 40
      %v351 = vadd.s32 %v345, 48
      %v352 = vadd.s32 %v345, 56
      %v353 = vadd.s32 %v345, 64
      %v354 = vadd.s32 %v345, 72
      %v355 = vadd.s32 %v345, 80
      %v356 = vadd.s32 %v345, 88
      %v357 = vadd.s32 %v345, 96
      %v358 = vadd.s32 %v345, 104
      %v359 = vadd.s32 %v345, 112
      %v360 = vadd.s32 %v345, 120
      %v361 = vlaneseq
      %v362 = vshrl.u32 %v361, 7
      %v363 = vsub.s32 1, %v362
      %v364 = vrot.slane %v336, %v363
      %vm365 = vcmp.eq.s32.totalorder %v345, %v364
      %vm366 = vcmp.eq.s32.totalorder %v346, %v364
      %vm367 = vcmp.eq.s32.totalorder %v347, %v364
      %vm368 = vcmp.eq.s32.totalorder %v348, %v364
      %vm369 = vcmp.eq.s32.totalorder %v349, %v364
      %vm370 = vcmp.eq.s32.totalorder %v350, %v364
      %vm371 = vcmp.eq.s32.totalorder %v351, %v364
      %vm372 = vcmp.eq.s32.totalorder %v352, %v364
      %vm373 = vcmp.eq.s32.totalorder %v353, %v364
      %vm374 = vcmp.eq.s32.totalorder %v354, %v364
      %vm375 = vcmp.eq.s32.totalorder %v355, %v364
      %vm376 = vcmp.eq.s32.totalorder %v356, %v364
      %vm377 = vcmp.eq.s32.totalorder %v357, %v364
      %vm378 = vcmp.eq.s32.totalorder %v358, %v364
      %vm379 = vcmp.eq.s32.totalorder %v359, %v364
      %vm380 = vcmp.eq.s32.totalorder %v360, %v364
      %v381 = vlaneseq
      %v382 = vshrl.u32 %v381, 7
      %v383 = vsub.s32 2, %v382
      %v384 = vrot.slane %v343, %v383
      %vm385 = vcmp.eq.s32.totalorder %v345, %v384
      %vm386 = vcmp.eq.s32.totalorder %v346, %v384
      %vm387 = vcmp.eq.s32.totalorder %v347, %v384
      %vm388 = vcmp.eq.s32.totalorder %v348, %v384
      %vm389 = vcmp.eq.s32.totalorder %v349, %v384
      %vm390 = vcmp.eq.s32.totalorder %v350, %v384
      %vm391 = vcmp.eq.s32.totalorder %v351, %v384
      %vm392 = vcmp.eq.s32.totalorder %v352, %v384
      %vm393 = vcmp.eq.s32.totalorder %v353, %v384
      %vm394 = vcmp.eq.s32.totalorder %v354, %v384
      %vm395 = vcmp.eq.s32.totalorder %v355, %v384
      %vm396 = vcmp.eq.s32.totalorder %v356, %v384
      %vm397 = vcmp.eq.s32.totalorder %v357, %v384
      %vm398 = vcmp.eq.s32.totalorder %v358, %v384
      %vm399 = vcmp.eq.s32.totalorder %v359, %v384
      %vm400 = vcmp.eq.s32.totalorder %v360, %v384
      %vm401 = vmor %vm365, %vm385
      %vm402 = vmor %vm366, %vm386
      %vm403 = vmor %vm367, %vm387
      %vm404 = vmor %vm368, %vm388
      %vm405 = vmor %vm369, %vm389
      %vm406 = vmor %vm370, %vm390
      %vm407 = vmor %vm371, %vm391
      %vm408 = vmor %vm372, %vm392
      %vm409 = vmor %vm373, %vm393
      %vm410 = vmor %vm374, %vm394
      %vm411 = vmor %vm375, %vm395
      %vm412 = vmor %vm376, %vm396
      %vm413 = vmor %vm377, %vm397
      %vm414 = vmor %vm378, %vm398
      %vm415 = vmor %vm379, %vm399
      %vm416 = vmor %vm380, %vm400
      %v417 = vsel %vm401, 1, 0
      %v418 = vsel %vm402, 1, 0
      %v419 = vsel %vm403, 1, 0
      %v420 = vsel %vm404, 1, 0
      %v421 = vsel %vm405, 1, 0
      %v422 = vsel %vm406, 1, 0
      %v423 = vsel %vm407, 1, 0
      %v424 = vsel %vm408, 1, 0
      %v425 = vsel %vm409, 1, 0
      %v426 = vsel %vm410, 1, 0
      %v427 = vsel %vm411, 1, 0
      %v428 = vsel %vm412, 1, 0
      %v429 = vsel %vm413, 1, 0
      %v430 = vsel %vm414, 1, 0
      %v431 = vsel %vm415, 1, 0
      %v432 = vsel %vm416, 1, 0
      %v433 = vcvt.s32.f32 %v417
      %v434 = vcvt.s32.f32 %v418
      %v435 = vcvt.s32.f32 %v419
      %v436 = vcvt.s32.f32 %v420
      %v437 = vcvt.s32.f32 %v421
      %v438 = vcvt.s32.f32 %v422
      %v439 = vcvt.s32.f32 %v423
      %v440 = vcvt.s32.f32 %v424
      %v441 = vcvt.s32.f32 %v425
      %v442 = vcvt.s32.f32 %v426
      %v443 = vcvt.s32.f32 %v427
      %v444 = vcvt.s32.f32 %v428
      %v445 = vcvt.s32.f32 %v429
      %v446 = vcvt.s32.f32 %v430
      %v447 = vcvt.s32.f32 %v431
      %v448 = vcvt.s32.f32 %v432
      %v449 = vld [vmem:[%s3] sm:$0xff]
      %v450 = vld [vmem:[%s3 + $0x8] sm:$0xff]
      %v451 = vld [vmem:[%s3 + $0x10] sm:$0xff]
      %v452 = vld [vmem:[%s3 + $0x18] sm:$0xff]
      %453 = vmatprep.subr.mxu0 0.0
      %454 = vmatpush1.msra.mxu0 %v448
      %455 = vmatprep.subr.mxu0 0.0
      %456 = vmatpush1.msra.mxu0 %v447
      %457 = vmatprep.subr.mxu0 0.0
      %458 = vmatpush1.msra.mxu0 %v446
      %459 = vmatprep.subr.mxu0 0.0
      %460 = vmatpush1.msra.mxu0 %v445
      %461 = vmatprep.subr.mxu0 0.0
      %462 = vmatpush1.msra.mxu0 %v444
      %463 = vmatprep.subr.mxu0 0.0
      %464 = vmatpush1.msra.mxu0 %v443
      %465 = vmatprep.subr.mxu0 0.0
      %466 = vmatpush1.msra.mxu0 %v442
      %467 = vmatprep.subr.mxu0 0.0
      %468 = vmatpush1.msra.mxu0 %v441
      %469 = vmatprep.subr.mxu0 0.0
      %470 = vmatpush1.msra.mxu0 %v440
      %471 = vmatprep.subr.mxu0 0.0
      %472 = vmatpush1.msra.mxu0 %v439
      %473 = vmatprep.subr.mxu0 0.0
      %474 = vmatpush1.msra.mxu0 %v438
      %475 = vmatprep.subr.mxu0 0.0
      %476 = vmatpush1.msra.mxu0 %v437
      %477 = vmatprep.subr.mxu0 0.0
      %478 = vmatpush1.msra.mxu0 %v436
      %479 = vmatprep.subr.mxu0 0.0
      %480 = vmatpush1.msra.mxu0 %v435
      %481 = vmatprep.subr.mxu0 0.0
      %482 = vmatpush1.msra.mxu0 %v434
      %483 = vmatprep.subr.mxu0 0.0
      %484 = vmatpush1.msra.mxu0 %v433
      %485 = vmatprep.subr.mxu0 0.0
      %486 = vmatpush2.msra.mxu0 0.0
      %487 = vmatprep.subr.mxu0 0.0
      %488 = vmatpush2.msra.mxu0 0.0
      %489 = vmatprep.subr.mxu0 0.0
      %490 = vmatpush2.msra.mxu0 0.0
      %491 = vmatprep.subr.mxu0 0.0
      %492 = vmatpush2.msra.mxu0 0.0
      %493 = vmatprep.subr.mxu0 0.0
      %494 = vmatpush2.msra.mxu0 0.0
      %495 = vmatprep.subr.mxu0 0.0
      %496 = vmatpush2.msra.mxu0 0.0
      %497 = vmatprep.subr.mxu0 0.0
      %498 = vmatpush2.msra.mxu0 0.0
      %499 = vmatprep.subr.mxu0 0.0
      %500 = vmatpush2.msra.mxu0 0.0
      %501 = vmatprep.subr.mxu0 0.0
      %502 = vmatpush2.msra.mxu0 0.0
      %503 = vmatprep.subr.mxu0 0.0
      %504 = vmatpush2.msra.mxu0 0.0
      %505 = vmatprep.subr.mxu0 0.0
      %506 = vmatpush2.msra.mxu0 0.0
      %507 = vmatprep.subr.mxu0 0.0
      %508 = vmatpush2.msra.mxu0 0.0
      %509 = vmatprep.subr.mxu0 0.0
      %510 = vmatpush2.msra.mxu0 0.0
      %511 = vmatprep.subr.mxu0 0.0
      %512 = vmatpush2.msra.mxu0 0.0
      %513 = vmatprep.subr.mxu0 0.0
      %514 = vmatpush2.msra.mxu0 0.0
      %515 = vmatprep.subr.mxu0 0.0
      %516 = vmatpush2.msra.mxu0 0.0
      %517 = vmatprep.mubr.f32.mxu0 0.0
      %518 = vmatmul.mubr.f32.gmra.mxu0 %v449
      %v519 = vpop.f32.mrf.mxu0
      %v520 = vadd.f32 0.0, %v519
      %v521 = vpop.f32.mrf.mxu0
      %522 = vmatprep.mubr.f32.mxu0 0.0
      %523 = vmatmul.mubr.f32.gmra.mxu0 %v450
      %v524 = vpop.f32.mrf.mxu0
      %v525 = vadd.f32 0.0, %v524
      %v526 = vpop.f32.mrf.mxu0
      %527 = vmatprep.mubr.f32.mxu0 0.0
      %528 = vmatmul.mubr.f32.gmra.mxu0 %v451
      %v529 = vpop.f32.mrf.mxu0
      %v530 = vadd.f32 0.0, %v529
      %v531 = vpop.f32.mrf.mxu0
      %532 = vmatprep.mubr.f32.mxu0 0.0
      %533 = vmatmul.mubr.f32.gmra.mxu0 %v452
      %v534 = vpop.f32.mrf.mxu0
      %v535 = vadd.f32 0.0, %v534
      %v536 = vpop.f32.mrf.mxu0
      %537 = vdwg.mxu0
      %v538 = vadd.f32 %v327, %v520
      %v539 = vadd.f32 %v328, %v525
      %v540 = vadd.f32 %v329, %v530
      %v541 = vadd.f32 %v330, %v535
      %v542 = vld [vmem:[%s261] sm:$0xff]
      %v543 = vld [vmem:[%s261 + $0x8] sm:$0xff]
      %v544 = vld [vmem:[%s261 + $0x10] sm:$0xff]
      %v545 = vld [vmem:[%s261 + $0x18] sm:$0xff]
      %v546 = vadd.f32 %v538, %v542
      %v547 = vadd.f32 %v539, %v543
      %v548 = vadd.f32 %v540, %v544
      %v549 = vadd.f32 %v541, %v545
      %550 = vst [vmem:[%s269] sm:$0xff] %v546
      %551 = vst [vmem:[%s269 + $0x8] sm:$0xff] %v547
      %552 = vst [vmem:[%s269 + $0x10] sm:$0xff] %v548
      %553 = vst [vmem:[%s269 + $0x18] sm:$0xff] %v549
      %p554 = scmp.lt.s32.totalorder %s21, 1
      %s555 = scalar_select %p554, %s21, 1
      %p556 = scmp.lt.s32.totalorder %s20, 0
      %s557 = scalar_select %p556, %s20, 0
      %s558 = smul.addr %s555, 4
      %s559 = sadd.s32 %s557, %s558
      %s560 = smul.addr %s559, 8
      %s561 = scalar_lea.vmem %s5, %s560
      // Predicated region
      $region41: #{data_embedding2.1} parent=39 // pred_check
        %p562 = pneg %p165
      $region42: #{data_embedding2.1} parent=39 // pred_check_branch
        %564 = sbr.rel (%p562) target = $region44
      $region43: #{data_embedding2.1} parent=39 // pred_region
        _
      $region44: #{data_embedding2.1} parent=39 // pred_fallthru
        _
    $region40: #{data_embedding2.1} parent=5 // pred_fallthru
      _
    %p565 = scmp.le.s32.totalorder 2, %s11
    // Predicated region
    $region45: #{data_embedding2.1} parent=5 // pred_check
      %p566 = pneg %p565
    $region46: #{data_embedding2.1} parent=5 // pred_check_branch
      %568 = sbr.rel (%p566) target = $region48
    $region47: #{data_embedding2.1} parent=5 // pred_region
      %s569 = ssub.s32 %s11, 2
      // Predicated region
      $region49: #{data_embedding2.1} parent=47 // pred_check
        %p570 = pneg %p171
      $region50: #{data_embedding2.1} parent=47 // pred_check_branch
        %572 = sbr.rel (%p570) target = $region52
      $region51: #{data_embedding2.1} parent=47 // pred_region
        %p573 = scmp.lt.s32.totalorder %s23, 1
        %s574 = scalar_select %p573, %s23, 1
        %p575 = scmp.lt.s32.totalorder %s22, 0
        %s576 = scalar_select %p575, %s22, 0
        %s577 = smul.addr %s574, 4
        %s578 = sadd.s32 %s576, %s577
        %s579 = smul.addr %s578, 8
        %s580 = scalar_lea.vmem %s5, %s579
      $region52: #{data_embedding2.1} parent=47 // pred_fallthru
        _
    $region48: #{data_embedding2.1} parent=5 // pred_fallthru
      _
  $region6: #{data_embedding2.1} parent=0 // loop_footer
    %s15 = sadd.s32 1, %s11
  $region7: #{data_embedding2.1} parent=0 // loop_footer_branch
    %10 = sbr.rel target = $region3
  $region8: #{data_embedding2.1} parent=0 // loop_exit
    _

</llo_original>
